<compile_context>
chip_gen: v6e
topology: v6e:2x2x1
jax: 0.10.0
libtpu: 0.0.40
codegen_flags: <defaults>
</compile_context>

<pallas_src>
import jax
import jax.numpy as jnp
from jax.experimental import pallas as pl
from jax.experimental.pallas import tpu as pltpu

ALPHA = 0.8
GAMMA = 2

_LANES = 128
_MAX_BLOCK_ROWS = 4096       # 4096 * 128 * 4B = 2 MiB per f32 input block
_NCORES = 2                  # shard the reduction across 2 TCs (v7x); harmless elsewhere
_PAD_X = -1e4                # softplus(-1e4) == 0 exactly in f32 -> padded BCE == 0 (with t = 0)
_VMEM_LIMIT = 32 << 20       # explicit scoped-VMEM budget (safe on v5e/v6e/v7x)


def _round_up(v, m):
    return ((v + m - 1) // m) * m


def _focal_bce_sum_kernel(x_ref, t_ref, o_ref, acc_ref):
    """Accumulates the per-element BCE sum into an (8, 128) accumulator."""
    i = pl.program_id(1)

    @pl.when(i == 0)
    def _():
        acc_ref[...] = jnp.zeros_like(acc_ref)

    x = x_ref[...].astype(jnp.float32)
    t = t_ref[...].astype(jnp.float32)

    # BCE with logits, matching F.sigmoid + F.binary_cross_entropy (which
    # clamps each log term at -100):
    #   log(sigmoid(x))     = -softplus(-x)
    #   log(1 - sigmoid(x)) = -softplus(x)
    #   bce = t*min(softplus(-x), 100) + (1-t)*min(softplus(x), 100)
    sp_pos = jnp.maximum(x, 0.0) + jnp.log1p(jnp.exp(-jnp.abs(x)))  # softplus(x)
    sp_neg = sp_pos - x                                             # softplus(-x)
    bce = t * jnp.minimum(sp_neg, 100.0) + (1.0 - t) * jnp.minimum(sp_pos, 100.0)

    # Fold row-groups of 8 into the (8, 128) accumulator with elementwise
    # adds only (VPU); the cross-lane reduce is deferred to the wrapper.
    r = bce.shape[0]
    acc_ref[...] += jnp.sum(bce.reshape(r // 8, 8, _LANES), axis=0)

    @pl.when(i == pl.num_programs(1) - 1)
    def _():
        o_ref[...] = acc_ref[...]


def focal_loss(inputs, targets, alpha=ALPHA, gamma=GAMMA):
    """Pallas TPU implementation of FocalLoss.forward (returns an f32 scalar)."""
    x = jnp.reshape(inputs, (-1,))
    t = jnp.reshape(targets, (-1,))
    n_valid = x.shape[0]

    rows = pl.cdiv(n_valid, _LANES)
    rows16 = _round_up(rows, 16)  # multiple of 16 rows (safe for bf16 sublane packing)

    if rows16 <= _MAX_BLOCK_ROWS:
        # Small input: one core, one grid step, whole slab as a single block.
        ncores = 1
        block_rows = rows16
    else:
        ncores = _NCORES
        block_rows = _MAX_BLOCK_ROWS

    rows_padded = _round_up(rows, ncores * block_rows)
    n_padded = rows_padded * _LANES
    pad = n_padded - n_valid
    if pad:
        x = jnp.pad(x, (0, pad), constant_values=_PAD_X)  # sentinel -> padded BCE == 0
        t = jnp.pad(t, (0, pad), constant_values=0)

    x2 = x.reshape(rows_padded, _LANES)
    t2 = t.reshape(rows_padded, _LANES)

    blocks_per_core = rows_padded // (ncores * block_rows)
    grid = (ncores, blocks_per_core)

    in_map = lambda c, i: (c * blocks_per_core + i, 0)

    partial = pl.pallas_call(
        _focal_bce_sum_kernel,
        out_shape=jax.ShapeDtypeStruct((ncores * 8, _LANES), jnp.float32),
        grid_spec=pltpu.PrefetchScalarGridSpec(
            num_scalar_prefetch=0,
            grid=grid,
            in_specs=[
                pl.BlockSpec((block_rows, _LANES), in_map),
                pl.BlockSpec((block_rows, _LANES), in_map),
            ],
            out_specs=pl.BlockSpec((8, _LANES), lambda c, i: (c, 0)),
            scratch_shapes=[pltpu.VMEM((8, _LANES), jnp.float32)],
        ),
        compiler_params=pltpu.CompilerParams(
            dimension_semantics=("parallel", "arbitrary"),
            vmem_limit_bytes=_VMEM_LIMIT,
        ),
    )(x2, t2)

    # Tiny scalar epilogue (cross-lane reduce over <= 2*8*128 partials + focal
    # transform) in plain JAX; keeps the kernel shape-stable and core-parallel.
    bce_mean = jnp.sum(partial) / jnp.float32(n_valid)
    bce_exp = jnp.exp(-bce_mean)
    return alpha * (1.0 - bce_exp) ** gamma * bce_mean


def _focal_loss_ref(inputs, targets, alpha=ALPHA, gamma=GAMMA):
    p = jax.nn.sigmoid(jnp.reshape(inputs, (-1,)).astype(jnp.float32))
    t = jnp.reshape(targets, (-1,)).astype(jnp.float32)
    bce = -(t * jnp.maximum(jnp.log(p), -100.0)
            + (1.0 - t) * jnp.maximum(jnp.log(1.0 - p), -100.0))
    bce = jnp.mean(bce)
    return alpha * (1.0 - jnp.exp(-bce)) ** gamma * bce


if __name__ == "__main__":
    key = jax.random.PRNGKey(0)
    k1, k2 = jax.random.split(key)
    # NCHW, matching the PyTorch convention: (batch=2, channels=4, 16, 16)
    x = jax.random.normal(k1, (2, 4, 16, 16), dtype=jnp.float32)
    targets = jax.random.bernoulli(k2, 0.5, (2, 4, 16, 16)).astype(jnp.float32)

    loss = focal_loss(x, targets)
    jax.block_until_ready(loss)

    ref = _focal_loss_ref(x, targets)
    assert jnp.allclose(loss, ref, rtol=1e-5, atol=1e-6), (loss, ref)
    print("KERNEL_OK")
</pallas_src>

<mosaic_0001>
module attributes {stable_mosaic.version = 11 : i64} {
  func.func @_focal_bce_sum_kernel(%arg0: i32, %arg1: i32, %arg2: memref<16x128xf32, #tpu.memory_space<vmem>>, %arg3: memref<16x128xf32, #tpu.memory_space<vmem>>, %arg4: memref<8x128xf32, #tpu.memory_space<vmem>>, %arg5: memref<8x128xf32, #tpu.memory_space<vmem>>) attributes {dimension_semantics = [#tpu.dimension_semantics<parallel>, #tpu.dimension_semantics<arbitrary>], iteration_bounds = array<i64: 1, 1>, scalar_prefetch = 0 : i64, scratch_operands = 1 : i64, tpu.core_type = #tpu.core_type<tc>, window_params = [{transform_indices = @transform_0, window_bounds = array<i64: 16, 128>}, {transform_indices = @transform_1, window_bounds = array<i64: 16, 128>}, {transform_indices = @transform_2, window_bounds = array<i64: 8, 128>}]} {
    %c0_i32 = arith.constant 0 : i32
    %0 = arith.cmpi eq, %arg1, %c0_i32 : i32
    %1 = arith.extui %0 : i1 to i32
    %c0_i32_0 = arith.constant 0 : i32
    %2 = arith.cmpi ne, %1, %c0_i32_0 : i32
    scf.if %2 {
      %cst_15 = arith.constant 0.000000e+00 : f32
      %31 = vector.broadcast %cst_15 : f32 to vector<8x128xf32>
      %c0_16 = arith.constant 0 : index
      %c0_17 = arith.constant 0 : index
      %32 = vector.load %arg5[%c0_16, %c0_17] : memref<8x128xf32, #tpu.memory_space<vmem>>, vector<8x128xf32>
      tpu.vector_store %arg5[%c0_16, %c0_17], %31 {strides = array<i32>} : memref<8x128xf32, #tpu.memory_space<vmem>>, vector<8x128xf32>,
    } else {
    }
    %c0 = arith.constant 0 : index
    %c0_1 = arith.constant 0 : index
    %3 = vector.load %arg2[%c0, %c0_1] : memref<16x128xf32, #tpu.memory_space<vmem>>, vector<16x128xf32>
    %c0_2 = arith.constant 0 : index
    %c0_3 = arith.constant 0 : index
    %4 = vector.load %arg3[%c0_2, %c0_3] : memref<16x128xf32, #tpu.memory_space<vmem>>, vector<16x128xf32>
    %cst = arith.constant 0.000000e+00 : f32
    %5 = vector.broadcast %cst : f32 to vector<16x128xf32>
    %6 = arith.maximumf %3, %5 : vector<16x128xf32>
    %7 = math.absf %3 : vector<16x128xf32>
    %cst_4 = arith.constant 0.000000e+00 : f32
    %8 = vector.broadcast %cst_4 : f32 to vector<16x128xf32>
    %9 = arith.subf %8, %7 : vector<16x128xf32>
    %10 = math.exp %9 : vector<16x128xf32>
    %11 = math.log1p %10 : vector<16x128xf32>
    %12 = arith.addf %6, %11 : vector<16x128xf32>
    %13 = arith.subf %12, %3 : vector<16x128xf32>
    %cst_5 = arith.constant 1.000000e+02 : f32
    %14 = vector.broadcast %cst_5 : f32 to vector<16x128xf32>
    %15 = arith.minimumf %13, %14 : vector<16x128xf32>
    %16 = arith.mulf %4, %15 : vector<16x128xf32>
    %cst_6 = arith.constant 1.000000e+00 : f32
    %17 = vector.broadcast %cst_6 : f32 to vector<16x128xf32>
    %18 = arith.subf %17, %4 : vector<16x128xf32>
    %cst_7 = arith.constant 1.000000e+02 : f32
    %19 = vector.broadcast %cst_7 : f32 to vector<16x128xf32>
    %20 = arith.minimumf %12, %19 : vector<16x128xf32>
    %21 = arith.mulf %18, %20 : vector<16x128xf32>
    %22 = arith.addf %16, %21 : vector<16x128xf32>
    %c0_8 = arith.constant 0 : index
    %c0_9 = arith.constant 0 : index
    %23 = vector.load %arg5[%c0_8, %c0_9] : memref<8x128xf32, #tpu.memory_space<vmem>>, vector<8x128xf32>
    %24 = vector.shape_cast %22 : vector<16x128xf32> to vector<2x8x128xf32>
    %cst_10 = arith.constant dense<0.000000e+00> : vector<8x128xf32>
    %25 = vector.multi_reduction <add>, %24, %cst_10 [0] : vector<2x8x128xf32> to vector<8x128xf32>
    %26 = arith.addf %23, %25 : vector<8x128xf32>
    %c0_11 = arith.constant 0 : index
    %c0_12 = arith.constant 0 : index
    %27 = vector.load %arg5[%c0_11, %c0_12] : memref<8x128xf32, #tpu.memory_space<vmem>>, vector<8x128xf32>
    tpu.vector_store %arg5[%c0_11, %c0_12], %26 {strides = array<i32>} : memref<8x128xf32, #tpu.memory_space<vmem>>, vector<8x128xf32>,
    %c0_i32_13 = arith.constant 0 : i32
    %28 = arith.cmpi eq, %arg1, %c0_i32_13 : i32
    %29 = arith.extui %28 : i1 to i32
    %c0_i32_14 = arith.constant 0 : i32
    %30 = arith.cmpi ne, %29, %c0_i32_14 : i32
    scf.if %30 {
      %c0_15 = arith.constant 0 : index
      %c0_16 = arith.constant 0 : index
      %31 = vector.load %arg5[%c0_15, %c0_16] : memref<8x128xf32, #tpu.memory_space<vmem>>, vector<8x128xf32>
      %c0_17 = arith.constant 0 : index
      %c0_18 = arith.constant 0 : index
      %32 = vector.load %arg4[%c0_17, %c0_18] : memref<8x128xf32, #tpu.memory_space<vmem>>, vector<8x128xf32>
      tpu.vector_store %arg4[%c0_17, %c0_18], %31 {strides = array<i32>} : memref<8x128xf32, #tpu.memory_space<vmem>>, vector<8x128xf32>,
    } else {
    }
    return
  }
  func.func @transform_0(%arg0: i32, %arg1: i32) -> (i32, i32) {
    %c1_i32 = arith.constant 1 : i32
    %0 = arith.muli %arg0, %c1_i32 : i32
    %1 = arith.addi %0, %arg1 : i32
    %c0_i32 = arith.constant 0 : i32
    %c0_i32_0 = arith.constant 0 : i32
    return %1, %c0_i32 : i32, i32
  }
  func.func @transform_1(%arg0: i32, %arg1: i32) -> (i32, i32) {
    %c1_i32 = arith.constant 1 : i32
    %0 = arith.muli %arg0, %c1_i32 : i32
    %1 = arith.addi %0, %arg1 : i32
    %c0_i32 = arith.constant 0 : i32
    %c0_i32_0 = arith.constant 0 : i32
    return %1, %c0_i32 : i32, i32
  }
  func.func @transform_2(%arg0: i32, %arg1: i32) -> (i32, i32) {
    %c0_i32 = arith.constant 0 : i32
    %c0_i32_0 = arith.constant 0 : i32
    return %arg0, %c0_i32 : i32, i32
  }
}

</mosaic_0001>

<llo_original>
// kernel: tpu_custom_call.1
$region0: #{tpu_custom_call.1}
  #allocation0 [shape = 'u32[]', space=smem, size = 0x4, offset = 0x4, fixed_abs, tag = 'smem constant byte address 0x4 - core index']
  #allocation1 [shape = 'u32[144,128]{1,0:T(1,128)}', space=vmem, size = 0x12000, scoped, tag = 'internal scratch']
  #allocation2 [shape = 'f32[8,128]{1,0:T(8,128)}', space=vmem, size = 0x1000, scoped, tag = 'scratch operand']
  %s0 = inlined_call_operand.hbm [shape: f32[16,128], index: 0, kind: input, shape index: {}]
  %s1 = inlined_call_operand.hbm [shape: f32[16,128], index: 1, kind: input, shape index: {}]
  %s2 = inlined_call_operand.hbm [shape: f32[8,128], index: 2, kind: output, shape index: {}]
  %s3 = sld [smem:[#allocation0]]
  $region34: #{tpu_custom_call.1} parent=0
    _
  %s5 = ssub.s32 1, %s3
  %s6 = scalar_select 0, %s5, %s3
  $region1: #{tpu_custom_call.1} parent=0
    #allocation3 [shape = 'u8[8192]{0}', space=vmem, size = 0x2000, scoped, tag = 'input window, operand 0, single buffered']
    #allocation4 [shape = 's32[1]{0}', space=sflag, size = 0x4, scoped, tag = 'scoped memory for tpu_custom_call.1']
    #allocation5 [shape = 's32[1]{0}', space=sflag, size = 0x4, scoped, tag = 'scoped memory for tpu_custom_call.1']
    #allocation6 [shape = 'u8[8192]{0}', space=vmem, size = 0x2000, scoped, tag = 'input window, operand 1, single buffered']
    #allocation7 [shape = 's32[1]{0}', space=sflag, size = 0x4, scoped, tag = 'scoped memory for tpu_custom_call.1']
    #allocation8 [shape = 'u8[4096]{0}', space=vmem, size = 0x1000, scoped, tag = 'output window, operand 0, single buffered']
    %7 = vsyncpa [#allocation4], 0
    %8 = vsyncpa [#allocation7], 0
    %9 = vsyncpa [#allocation5], 0
    // Predicated region
    $region2: #{tpu_custom_call.1} parent=1 // pred_check
      _
    $region3: #{tpu_custom_call.1} parent=1 // pred_check_branch
      %11 = sbr.rel (0) target = $region5
    $region4: #{tpu_custom_call.1} parent=1 // pred_region
      %s12 = sadd.s32 0, 0
      %s13 = smul.u32 2, %s12
      %s15 = ssub.s32 256, 256
      %16 = vsyncadd [#allocation4], %s15
      %s17 = smul.addr %s13, 128
      %s18 = scalar_lea.hbm %s0, %s17
      %s19 = sshll.u32 [#allocation3], 4
      %s20 = int_to_ptr.vmem [resolvable:$true] %s19
      %25 = dma.hbm_to_vmem [thread:$0]  %s18, 256, %s20, [#allocation4], 128, 128, 8
    $region5: #{tpu_custom_call.1} parent=1 // pred_fallthru
      _
    // Predicated region
    $region6: #{tpu_custom_call.1} parent=1 // pred_check
      _
    $region7: #{tpu_custom_call.1} parent=1 // pred_check_branch
      %27 = sbr.rel (0) target = $region9
    $region8: #{tpu_custom_call.1} parent=1 // pred_region
      %s28 = sadd.s32 0, 0
      %s29 = smul.u32 2, %s28
      %s31 = ssub.s32 256, 256
      %32 = vsyncadd [#allocation7], %s31
      %s33 = smul.addr %s29, 128
      %s34 = scalar_lea.hbm %s1, %s33
      %s35 = sshll.u32 [#allocation6], 4
      %s36 = int_to_ptr.vmem [resolvable:$true] %s35
      %41 = dma.hbm_to_vmem [thread:$0]  %s34, 256, %s36, [#allocation7], 128, 128, 8
    $region9: #{tpu_custom_call.1} parent=1 // pred_fallthru
      _
    // Predicated region
    $region10: #{tpu_custom_call.1} parent=1 // pred_check
      _
    $region11: #{tpu_custom_call.1} parent=1 // pred_check_branch
      %43 = sbr.rel (0) target = $region13
    $region12: #{tpu_custom_call.1} parent=1 // pred_region
      %44 = dma.done [#allocation4], 256
    $region13: #{tpu_custom_call.1} parent=1 // pred_fallthru
      _
    // Predicated region
    $region14: #{tpu_custom_call.1} parent=1 // pred_check
      _
    $region15: #{tpu_custom_call.1} parent=1 // pred_check_branch
      %46 = sbr.rel (0) target = $region17
    $region16: #{tpu_custom_call.1} parent=1 // pred_region
      %47 = dma.done [#allocation7], 256
    $region17: #{tpu_custom_call.1} parent=1 // pred_fallthru
      _
    %s48 = sadd.s32 0, 0
    %s49 = smul.u32 2, %s48
    %s50 = sadd.s32 0, 0
    %s51 = smul.u32 2, %s50
    %p52 = scmp.eq.s32.totalorder 0, 0
    // Predicated region
    $region18: #{tpu_custom_call.1} parent=1 // pred_check
      %p53 = pneg %p52
    $region19: #{tpu_custom_call.1} parent=1 // pred_check_branch
      %55 = sbr.rel (%p53) target = $region21
    $region20: #{tpu_custom_call.1} parent=1 // pred_region
      %56 = vst [vmem:[#allocation2] sm:$0xff] 0.0
    $region21: #{tpu_custom_call.1} parent=1 // pred_fallthru
      _
    %v57 = vld [vmem:[#allocation3] sm:$0xff]
    %v58 = vld [vmem:[#allocation3 + $0x8] sm:$0xff]
    %v59 = vld [vmem:[#allocation6] sm:$0xff]
    %v60 = vld [vmem:[#allocation6 + $0x8] sm:$0xff]
    %v61 = vmax.f32 %v57, 0.0
    %v62 = vmax.f32 %v58, 0.0
    %v63 = vand.u32 2147483647, %v57
    %v64 = vand.u32 2147483647, %v58
    %v65 = vsub.f32 0.0, %v63
    %v66 = vsub.f32 0.0, %v64
    %v67 = vmul.f32 %v65, 1.442695
    %v68 = vpow.pop %v67
    %v69 = vmul.f32 %v66, 1.442695
    %v70 = vpow.pop %v69
    %v71 = vadd.f32 %v68, 1.0
    %v72 = vlog2.pop %v71
    %v73 = vmul.f32 %v72, 0.6931472
    %v74 = vmul.f32 -0.5, %v68
    %v75 = vadd.f32 %v74, 1.0
    %v76 = vmul.f32 %v75, %v68
    %v77 = vand.u32 2147483647, %v68
    %vm78 = vcmp.lt.f32.partialorder %v77, 0.0004427343
    %v79 = vsel %vm78, %v76, %v73
    %v80 = vadd.f32 %v70, 1.0
    %v81 = vlog2.pop %v80
    %v82 = vmul.f32 %v81, 0.6931472
    %v83 = vmul.f32 -0.5, %v70
    %v84 = vadd.f32 %v83, 1.0
    %v85 = vmul.f32 %v84, %v70
    %v86 = vand.u32 2147483647, %v70
    %vm87 = vcmp.lt.f32.partialorder %v86, 0.0004427343
    %v88 = vsel %vm87, %v85, %v82
    %v89 = vadd.f32 %v61, %v79
    %v90 = vadd.f32 %v62, %v88
    %v91 = vsub.f32 %v89, %v57
    %v92 = vsub.f32 %v90, %v58
    %v93 = vmin.f32 %v91, 100.0
    %v94 = vmin.f32 %v92, 100.0
    %v95 = vmul.f32 %v59, %v93
    %v96 = vmul.f32 %v60, %v94
    %v97 = vsub.f32 1.0, %v59
    %v98 = vsub.f32 1.0, %v60
    %v99 = vmin.f32 %v89, 100.0
    %v100 = vmin.f32 %v90, 100.0
    %v101 = vmul.f32 %v97, %v99
    %v102 = vmul.f32 %v98, %v100
    %v103 = vadd.f32 %v95, %v101
    %v104 = vadd.f32 %v96, %v102
    %v105 = vld [vmem:[#allocation2] sm:$0xff]
    %v106 = vadd.f32 %v103, %v104
    %v107 = vadd.f32 %v105, %v106
    %108 = vst [vmem:[#allocation2] sm:$0xff] %v107
    // Predicated region
    $region22: #{tpu_custom_call.1} parent=1 // pred_check
      %p109 = pneg %p52
    $region23: #{tpu_custom_call.1} parent=1 // pred_check_branch
      %111 = sbr.rel (%p109) target = $region25
    $region24: #{tpu_custom_call.1} parent=1 // pred_region
      %v112 = vld [vmem:[#allocation2] sm:$0xff]
      %113 = vst [vmem:[#allocation8] sm:$0xff] %v112
    $region25: #{tpu_custom_call.1} parent=1 // pred_fallthru
      _
    // Predicated region
    $region26: #{tpu_custom_call.1} parent=1 // pred_check
      _
    $region27: #{tpu_custom_call.1} parent=1 // pred_check_branch
      %115 = sbr.rel (0) target = $region29
    $region28: #{tpu_custom_call.1} parent=1 // pred_region
      %s117 = ssub.s32 128, 128
      %118 = vsyncadd [#allocation5], %s117
      %s120 = sshll.u32 [#allocation8], 4
      %s121 = int_to_ptr.vmem [resolvable:$true] %s120
      %123 = dma.vmem_to_hbm [thread:$0]  %s121, 128, %s2, [#allocation5]
    $region29: #{tpu_custom_call.1} parent=1 // pred_fallthru
      _
    // Predicated region
    $region30: #{tpu_custom_call.1} parent=1 // pred_check
      _
    $region31: #{tpu_custom_call.1} parent=1 // pred_check_branch
      %125 = sbr.rel (0) target = $region33
    $region32: #{tpu_custom_call.1} parent=1 // pred_region
      %126 = dma.done [#allocation5], 128
    $region33: #{tpu_custom_call.1} parent=1 // pred_fallthru
      _
    %127 = vsyncpa [#allocation4], 1
    %128 = vsyncpa [#allocation7], 1
    %129 = vsyncpa [#allocation5], 1

</llo_original>
